<compile_context>
chip_gen: v7x
topology: tpu7x:2x2x1
jax: 0.10.0
libtpu: 0.0.40
codegen_flags: <defaults>
</compile_context>

<pallas_src>
import math

import jax
import jax.numpy as jnp
import numpy as np
from jax.experimental import pallas as pl
from jax.experimental.pallas import tpu as pltpu
from jax.scipy.linalg import cho_factor, cho_solve

_HALF_LOG_2PI_E = 0.5 * math.log(2.0 * math.pi * math.e)
_VAR_FLOOR = 1e-20


def _round_up(x, m):
    return (x + m - 1) // m * m


def _kron_laplace_fwd_kernel(scal_ref, xT_ref, cov_ref, w_ref, out_ref,
                             quad_acc, mu_acc):
    """Fused GLM-predictive + marginal-entropy kernel (one batch tile).

    grid = (batch tiles i, cov row-blocks j)   -- j is the contraction axis.

    scal_ref : SMEM (3,)        [bias, Sigma_b, sigma_noise^2]   (scalar prefetch)
    xT_ref   : VMEM (D, TM)     x^T tile, batch on lanes, resident across j
    cov_ref  : VMEM (TK, D)     Sigma_w row block j (streamed)
    w_ref    : VMEM (TK, 1)     weight slice for block j
    out_ref  : VMEM (3, TM)     packed lane-dense outputs [mu; f_var; entropy]
    quad_acc : VMEM (1, TM) f32 running x^T Sigma x
    mu_acc   : VMEM (1, TM) f32 running x . w
    """
    j = pl.program_id(1)
    nj = pl.num_programs(1)
    tk = cov_ref.shape[0]

    @pl.when(j == 0)
    def _init():
        quad_acc[...] = jnp.zeros_like(quad_acc)
        mu_acc[...] = jnp.zeros_like(mu_acc)

    xT = xT_ref[...]                       # (D, TM) compute dtype
    cov_blk = cov_ref[...]                 # (TK, D)

    # MXU: Y = Sigma_w[jblock, :] @ x^T  -> (TK, TM), f32 accumulation.
    y = jnp.dot(cov_blk, xT, preferred_element_type=jnp.float32)

    # Matching x^T row block sliced from the batch-resident tile (8/128-aligned).
    row0 = pl.multiple_of(j * tk, tk)
    x_blk = xT_ref[pl.ds(row0, tk), :].astype(jnp.float32)      # (TK, TM)

    # Partial quadratic form: VPU multiply + sublane reduce, lane-dense result.
    quad_acc[...] += jnp.sum(x_blk * y, axis=0, keepdims=True)          # (1, TM)
    # Partial mean: broadcast-multiply against w (no width-1 MXU matvec).
    mu_acc[...] += jnp.sum(x_blk * w_ref[...], axis=0, keepdims=True)   # (1, TM)

    @pl.when(j == nj - 1)
    def _finalize():
        bias = scal_ref[0]
        sigma_b = scal_ref[1]
        sig2 = scal_ref[2]
        mu = mu_acc[...] + bias
        fvar = quad_acc[...] + sigma_b
        var = jnp.maximum(sig2 + fvar, _VAR_FLOOR)          # guard against NaN log
        ent = 0.5 * jnp.log(var) + _HALF_LOG_2PI_E
        out_ref[0:1, :] = mu
        out_ref[1:2, :] = fvar
        out_ref[2:3, :] = ent


def kron_laplace_forward(x_nchw, w, b, cov_w, sigma_b, sigma_noise,
                         *, block_n=512, block_k=512,
                         compute_dtype=jnp.bfloat16):
    """Returns (f_mu (N,1), f_var_diag (N,1), unc (N,)) — mirrors (dists, unc)."""
    assert block_n % 128 == 0 and block_k % 128 == 0
    N = x_nchw.shape[0]
    D = int(np.prod(x_nchw.shape[1:]))
    x = x_nchw.reshape(N, D).astype(jnp.float32)

    # Batch maps to lanes, contraction blocks to sublanes -> pad to tiles.
    tm = min(block_n, _round_up(N, 128))
    n_pad = _round_up(N, tm)
    tk = min(block_k, _round_up(D, 128))
    d_pad = _round_up(D, tk)

    # Zero padding contributes nothing to the quadratic form / mean.
    x_p = jnp.zeros((n_pad, d_pad), jnp.float32).at[:N, :D].set(x)
    cov_p = jnp.zeros((d_pad, d_pad), jnp.float32).at[:D, :D].set(
        cov_w.astype(jnp.float32))
    w_p = jnp.zeros((d_pad, 1), jnp.float32).at[:D, 0].set(
        jnp.asarray(w, jnp.float32).reshape(D))

    xT = x_p.T.astype(compute_dtype)       # (D, N_pad): batch on lanes
    cov_c = cov_p.astype(compute_dtype)

    scalars = jnp.array([b, sigma_b, sigma_noise ** 2], dtype=jnp.float32)

    grid = (n_pad // tm, d_pad // tk)

    out = pl.pallas_call(
        _kron_laplace_fwd_kernel,
        out_shape=jax.ShapeDtypeStruct((3, n_pad), jnp.float32),
        grid_spec=pltpu.PrefetchScalarGridSpec(
            num_scalar_prefetch=1,
            grid=grid,
            in_specs=[
                # x^T tile: resident across the whole contraction (index ignores j)
                pl.BlockSpec((d_pad, tm), lambda i, j, s: (0, i)),
                # Sigma_w row blocks: streamed / double-buffered along j
                pl.BlockSpec((tk, d_pad), lambda i, j, s: (j, 0)),
                # weight slice for block j
                pl.BlockSpec((tk, 1), lambda i, j, s: (j, 0)),
            ],
            out_specs=pl.BlockSpec((3, tm), lambda i, j, s: (0, i)),
            scratch_shapes=[
                pltpu.VMEM((1, tm), jnp.float32),   # quad accumulator
                pltpu.VMEM((1, tm), jnp.float32),   # mu accumulator
            ],
        ),
        compiler_params=pltpu.CompilerParams(
            dimension_semantics=("parallel", "arbitrary"),
            vmem_limit_bytes=32 * 1024 * 1024,
        ),
    )(scalars, xT, cov_c, w_p)

    mu = out[0, :N].reshape(N, 1)
    fvar = out[1, :N].reshape(N, 1)
    unc = out[2, :N]
    return mu, fvar, unc


def build_params(key, D):
    """Deterministic parameter / KFAC-factor setup (module __init__ + store_factors)."""
    k_w, k_a = jax.random.split(key)

    # Linear model params (single output).
    w = 0.01 * jax.random.normal(k_w, (D,), dtype=jnp.float32)
    b = 0.0

    # Hyperparameters: log_sigma_noise = log_prior_sig = log_temp = 0.
    sigma_noise = 1.0
    prior_prec = 1.0
    temp = 1.0
    h_factor = 1.0 / (sigma_noise ** 2 * temp)

    # Synthetic KFAC factors (what store_factors would have saved).
    G = jax.random.normal(k_a, (4 * D, D), dtype=jnp.float32)
    A = (G.T @ G) / (4 * D) + 0.1 * jnp.eye(D, dtype=jnp.float32)
    B = jnp.array([[1.0]], dtype=jnp.float32)
    H_bias = 32.0

    # TODO(synk): laplace-torch's Kron eigendecomposition / posterior inverse has no
    # clean Pallas equivalent; it is one-time setup glue done here in plain JAX
    # (SPD Cholesky solve instead of a generic inverse for stability).
    prec_w = h_factor * B[0, 0] * A + prior_prec * jnp.eye(D, dtype=jnp.float32)
    chol = cho_factor(prec_w, lower=True)
    cov_w = cho_solve(chol, jnp.eye(D, dtype=jnp.float32))
    cov_w = 0.5 * (cov_w + cov_w.T)
    sigma_b = 1.0 / (h_factor * H_bias + prior_prec)

    return w, b, cov_w, float(sigma_b), sigma_noise


if __name__ == "__main__":
    key = jax.random.PRNGKey(0)
    k_params, k_x = jax.random.split(key)

    # Small NCHW input consistent with config['input_shape'] = [C, H, W].
    N, C, H, W = 8, 4, 16, 8           # D = C*H*W = 512
    D = C * H * W
    x = jax.random.normal(k_x, (N, C, H, W), dtype=jnp.float32)

    w, b, cov_w, sigma_b, sigma_noise = build_params(k_params, D)

    # Small tiles so the demo exercises the batch x contraction grid (grid = (1, 4)).
    mu, fvar, unc = kron_laplace_forward(
        x, w, b, cov_w, sigma_b, sigma_noise,
        block_n=128, block_k=128, compute_dtype=jnp.bfloat16)
    jax.block_until_ready((mu, fvar, unc))

    # Pure-JAX reference of the same math on the same (bf16-rounded) MXU operands.
    xf = x.reshape(N, D)
    x_c = xf.astype(jnp.bfloat16).astype(jnp.float32)
    cov_c = cov_w.astype(jnp.bfloat16).astype(jnp.float32)
    mu_ref = x_c @ w.reshape(D, 1) + b
    fvar_ref = jnp.sum(x_c * (x_c @ cov_c.T), axis=-1, keepdims=True) + sigma_b
    var_ref = jnp.maximum(sigma_noise ** 2 + fvar_ref, 1e-20)
    unc_ref = (0.5 * jnp.log(var_ref) + 0.5 * math.log(2 * math.pi * math.e)).reshape(N)

    assert mu.shape == (N, 1) and fvar.shape == (N, 1) and unc.shape == (N,)
    assert jnp.allclose(mu, mu_ref, rtol=2e-3, atol=2e-3)
    assert jnp.allclose(fvar, fvar_ref, rtol=2e-3, atol=2e-3)
    assert jnp.allclose(unc, unc_ref, rtol=2e-3, atol=2e-3)

    print("KERNEL_OK")
</pallas_src>

<mosaic_0001>
module attributes {stable_mosaic.version = 11 : i64} {
  func.func @_kron_laplace_fwd_kernel(%arg0: i32, %arg1: i32, %arg2: memref<3xf32, #tpu.memory_space<smem>>, %arg3: memref<512x128xbf16, #tpu.memory_space<vmem>>, %arg4: memref<128x512xbf16, #tpu.memory_space<vmem>>, %arg5: memref<128x1xf32, #tpu.memory_space<vmem>>, %arg6: memref<3x128xf32, #tpu.memory_space<vmem>>, %arg7: memref<1x128xf32, #tpu.memory_space<vmem>>, %arg8: memref<1x128xf32, #tpu.memory_space<vmem>>) attributes {dimension_semantics = [#tpu.dimension_semantics<parallel>, #tpu.dimension_semantics<arbitrary>], iteration_bounds = array<i64: 1, 4>, scalar_prefetch = 1 : i64, scratch_operands = 2 : i64, tpu.core_type = #tpu.core_type<tc>, window_params = [{transform_indices = @transform_0, window_bounds = array<i64: 512, 128>}, {transform_indices = @transform_1, window_bounds = array<i64: 128, 512>}, {transform_indices = @transform_2, window_bounds = array<i64: 128, 1>}, {transform_indices = @transform_3, window_bounds = array<i64: 3, 128>}]} {
    %c0_i32 = arith.constant 0 : i32
    %0 = arith.cmpi eq, %arg1, %c0_i32 : i32
    %1 = arith.extui %0 : i1 to i32
    %c0_i32_0 = arith.constant 0 : i32
    %2 = arith.cmpi ne, %1, %c0_i32_0 : i32
    scf.if %2 {
      %cst_18 = arith.constant 0.000000e+00 : f32
      %28 = vector.broadcast %cst_18 : f32 to vector<1x128xf32>
      %c0_19 = arith.constant 0 : index
      %c0_20 = arith.constant 0 : index
      %29 = vector.load %arg7[%c0_19, %c0_20] : memref<1x128xf32, #tpu.memory_space<vmem>>, vector<1x128xf32>
      tpu.vector_store %arg7[%c0_19, %c0_20], %28 {strides = array<i32>} : memref<1x128xf32, #tpu.memory_space<vmem>>, vector<1x128xf32>,
      %cst_21 = arith.constant 0.000000e+00 : f32
      %30 = vector.broadcast %cst_21 : f32 to vector<1x128xf32>
      %c0_22 = arith.constant 0 : index
      %c0_23 = arith.constant 0 : index
      %31 = vector.load %arg8[%c0_22, %c0_23] : memref<1x128xf32, #tpu.memory_space<vmem>>, vector<1x128xf32>
      tpu.vector_store %arg8[%c0_22, %c0_23], %30 {strides = array<i32>} : memref<1x128xf32, #tpu.memory_space<vmem>>, vector<1x128xf32>,
    } else {
    }
    %c0 = arith.constant 0 : index
    %c0_1 = arith.constant 0 : index
    %3 = vector.load %arg3[%c0, %c0_1] : memref<512x128xbf16, #tpu.memory_space<vmem>>, vector<512x128xbf16>
    %c0_2 = arith.constant 0 : index
    %c0_3 = arith.constant 0 : index
    %4 = vector.load %arg4[%c0_2, %c0_3] : memref<128x512xbf16, #tpu.memory_space<vmem>>, vector<128x512xbf16>
    %cst = arith.constant dense<0.000000e+00> : vector<128x128xf32>
    %5 = tpu.matmul %4, %3, %cst {dimension_numbers = #tpu.dot_dimension_numbers<[1], [0], [0], [1], [0, 0, 1, 1], [], []>} : vector<128x512xbf16>, vector<512x128xbf16>, vector<128x128xf32> -> vector<128x128xf32>
    %c128_i32 = arith.constant 128 : i32
    %6 = arith.muli %arg1, %c128_i32 : i32
    %7 = tpu.assume_multiple %6, 128 : i32
    %8 = arith.index_cast %7 : i32 to index
    %c0_4 = arith.constant 0 : index
    %9 = vector.load %arg3[%8, %c0_4] : memref<512x128xbf16, #tpu.memory_space<vmem>>, vector<128x128xbf16>
    %10 = arith.extf %9 : vector<128x128xbf16> to vector<128x128xf32>
    %c0_5 = arith.constant 0 : index
    %c0_6 = arith.constant 0 : index
    %11 = vector.load %arg7[%c0_5, %c0_6] : memref<1x128xf32, #tpu.memory_space<vmem>>, vector<1x128xf32>
    %12 = arith.mulf %10, %5 : vector<128x128xf32>
    %cst_7 = arith.constant dense<0.000000e+00> : vector<128xf32>
    %13 = vector.multi_reduction <add>, %12, %cst_7 [0] : vector<128x128xf32> to vector<128xf32>
    %14 = vector.shape_cast %13 : vector<128xf32> to vector<1x128xf32>
    %15 = arith.addf %11, %14 : vector<1x128xf32>
    %c0_8 = arith.constant 0 : index
    %c0_9 = arith.constant 0 : index
    %16 = vector.load %arg7[%c0_8, %c0_9] : memref<1x128xf32, #tpu.memory_space<vmem>>, vector<1x128xf32>
    tpu.vector_store %arg7[%c0_8, %c0_9], %15 {strides = array<i32>} : memref<1x128xf32, #tpu.memory_space<vmem>>, vector<1x128xf32>,
    %c0_10 = arith.constant 0 : index
    %c0_11 = arith.constant 0 : index
    %17 = vector.load %arg8[%c0_10, %c0_11] : memref<1x128xf32, #tpu.memory_space<vmem>>, vector<1x128xf32>
    %c0_12 = arith.constant 0 : index
    %c0_13 = arith.constant 0 : index
    %18 = vector.load %arg5[%c0_12, %c0_13] : memref<128x1xf32, #tpu.memory_space<vmem>>, vector<128x1xf32>
    %19 = vector.broadcast %18 : vector<128x1xf32> to vector<128x128xf32>
    %20 = arith.mulf %10, %19 : vector<128x128xf32>
    %cst_14 = arith.constant dense<0.000000e+00> : vector<128xf32>
    %21 = vector.multi_reduction <add>, %20, %cst_14 [0] : vector<128x128xf32> to vector<128xf32>
    %22 = vector.shape_cast %21 : vector<128xf32> to vector<1x128xf32>
    %23 = arith.addf %17, %22 : vector<1x128xf32>
    %c0_15 = arith.constant 0 : index
    %c0_16 = arith.constant 0 : index
    %24 = vector.load %arg8[%c0_15, %c0_16] : memref<1x128xf32, #tpu.memory_space<vmem>>, vector<1x128xf32>
    tpu.vector_store %arg8[%c0_15, %c0_16], %23 {strides = array<i32>} : memref<1x128xf32, #tpu.memory_space<vmem>>, vector<1x128xf32>,
    %c3_i32 = arith.constant 3 : i32
    %25 = arith.cmpi eq, %arg1, %c3_i32 : i32
    %26 = arith.extui %25 : i1 to i32
    %c0_i32_17 = arith.constant 0 : i32
    %27 = arith.cmpi ne, %26, %c0_i32_17 : i32
    scf.if %27 {
      %c0_18 = arith.constant 0 : index
      %28 = memref.load %arg2[%c0_18] : memref<3xf32, #tpu.memory_space<smem>>
      %c1 = arith.constant 1 : index
      %29 = memref.load %arg2[%c1] : memref<3xf32, #tpu.memory_space<smem>>
      %c2 = arith.constant 2 : index
      %30 = memref.load %arg2[%c2] : memref<3xf32, #tpu.memory_space<smem>>
      %c0_19 = arith.constant 0 : index
      %c0_20 = arith.constant 0 : index
      %31 = vector.load %arg8[%c0_19, %c0_20] : memref<1x128xf32, #tpu.memory_space<vmem>>, vector<1x128xf32>
      %32 = vector.broadcast %28 : f32 to vector<1x128xf32>
      %33 = arith.addf %31, %32 : vector<1x128xf32>
      %c0_21 = arith.constant 0 : index
      %c0_22 = arith.constant 0 : index
      %34 = vector.load %arg7[%c0_21, %c0_22] : memref<1x128xf32, #tpu.memory_space<vmem>>, vector<1x128xf32>
      %35 = vector.broadcast %29 : f32 to vector<1x128xf32>
      %36 = arith.addf %34, %35 : vector<1x128xf32>
      %37 = vector.broadcast %30 : f32 to vector<1x128xf32>
      %38 = arith.addf %37, %36 : vector<1x128xf32>
      %cst_23 = arith.constant 9.99999968E-21 : f32
      %39 = vector.broadcast %cst_23 : f32 to vector<1x128xf32>
      %40 = arith.maximumf %38, %39 : vector<1x128xf32>
      %41 = math.log %40 : vector<1x128xf32>
      %cst_24 = arith.constant 5.000000e-01 : f32
      %42 = vector.broadcast %cst_24 : f32 to vector<1x128xf32>
      %43 = arith.mulf %42, %41 : vector<1x128xf32>
      %cst_25 = arith.constant 1.41893852 : f32
      %44 = vector.broadcast %cst_25 : f32 to vector<1x128xf32>
      %45 = arith.addf %43, %44 : vector<1x128xf32>
      %c0_26 = arith.constant 0 : index
      %c0_27 = arith.constant 0 : index
      %46 = vector.load %arg6[%c0_26, %c0_27] : memref<3x128xf32, #tpu.memory_space<vmem>>, vector<1x128xf32>
      tpu.vector_store %arg6[%c0_26, %c0_27], %33 {strides = array<i32>} : memref<3x128xf32, #tpu.memory_space<vmem>>, vector<1x128xf32>,
      %c1_28 = arith.constant 1 : index
      %c0_29 = arith.constant 0 : index
      %47 = vector.load %arg6[%c1_28, %c0_29] : memref<3x128xf32, #tpu.memory_space<vmem>>, vector<1x128xf32>
      tpu.vector_store %arg6[%c1_28, %c0_29], %36 {strides = array<i32>} : memref<3x128xf32, #tpu.memory_space<vmem>>, vector<1x128xf32>,
      %c2_30 = arith.constant 2 : index
      %c0_31 = arith.constant 0 : index
      %48 = vector.load %arg6[%c2_30, %c0_31] : memref<3x128xf32, #tpu.memory_space<vmem>>, vector<1x128xf32>
      tpu.vector_store %arg6[%c2_30, %c0_31], %45 {strides = array<i32>} : memref<3x128xf32, #tpu.memory_space<vmem>>, vector<1x128xf32>,
    } else {
    }
    return
  }
  func.func @transform_0(%arg0: i32, %arg1: i32, %arg2: memref<3xf32, #tpu.memory_space<smem>>) -> (i32, i32) {
    %c0_i32 = arith.constant 0 : i32
    %c0_i32_0 = arith.constant 0 : i32
    return %c0_i32, %arg0 : i32, i32
  }
  func.func @transform_1(%arg0: i32, %arg1: i32, %arg2: memref<3xf32, #tpu.memory_space<smem>>) -> (i32, i32) {
    %c0_i32 = arith.constant 0 : i32
    %c0_i32_0 = arith.constant 0 : i32
    return %arg1, %c0_i32 : i32, i32
  }
  func.func @transform_2(%arg0: i32, %arg1: i32, %arg2: memref<3xf32, #tpu.memory_space<smem>>) -> (i32, i32) {
    %c0_i32 = arith.constant 0 : i32
    %c0_i32_0 = arith.constant 0 : i32
    return %arg1, %c0_i32 : i32, i32
  }
  func.func @transform_3(%arg0: i32, %arg1: i32, %arg2: memref<3xf32, #tpu.memory_space<smem>>) -> (i32, i32) {
    %c0_i32 = arith.constant 0 : i32
    %c0_i32_0 = arith.constant 0 : i32
    return %c0_i32, %arg0 : i32, i32
  }
}

</mosaic_0001>

<llo_original>
// kernel: tpu_custom_call.1
$region0: #{tpu_custom_call.1}
  #allocation0 [shape = 'u32[]', space=smem, size = 0x4, offset = 0x4, fixed_abs, tag = 'smem constant byte address 0x4 - core index']
  #allocation1 [shape = 'u32[144,128]{1,0:T(1,128)}', space=vmem, size = 0x12000, scoped, tag = 'internal scratch']
  #allocation2 [shape = 'f32[1,128]{1,0:T(1,128)}', space=vmem, size = 0x200, scoped, tag = 'scratch operand']
  #allocation3 [shape = 'f32[1,128]{1,0:T(1,128)}', space=vmem, size = 0x200, scoped, tag = 'scratch operand']
  #allocation4 [shape = 's32[1]{0}', space=sflag, size = 0x4, scoped, tag = 'scoped memory for tpu_custom_call.1']
  #allocation5 [shape = 'u8[512]{0}', space=smem, size = 0x200, scoped, tag = 'prefetched SMEM operand 0']
  %s0 = inlined_call_operand.vmem [shape: f32[3], index: 0, kind: input, shape index: {}]
  %s1 = inlined_call_operand.vmem [shape: bf16[512,128], index: 1, kind: input, shape index: {}]
  %s2 = inlined_call_operand.hbm [shape: bf16[512,512], index: 2, kind: input, shape index: {}]
  %s3 = inlined_call_operand.vmem [shape: f32[512,1], index: 3, kind: input, shape index: {}]
  %s4 = inlined_call_operand.hbm [shape: f32[3,128], index: 4, kind: output, shape index: {}]
  %s5 = sld [smem:[#allocation0]]
  $region57: #{tpu_custom_call.1} parent=0
    _
  %s7 = ssub.s32 1, %s5
  %s8 = scalar_select 0, %s7, %s5
  %s9 = sshll.u32 %s0, 4
  %s10 = int_to_ptr.vmem [resolvable:$true] %s9
  %12 = dma.vmem_to_smem %s10, 16, [#allocation5], [#allocation4]
  %13 = dma.done [#allocation4], 16
  %14 = sfence
  $region1: #{tpu_custom_call.1} parent=0
    #allocation6 [shape = 'u8[262144]{0}', space=vmem, size = 0x40000, scoped, tag = 'input window, operand 2']
    #allocation7 [shape = 's32[2]{0}', space=sflag, size = 0x8, scoped, tag = 'scoped memory for tpu_custom_call.1']
    #allocation8 [shape = 's32[2]{0}', space=sflag, size = 0x8, scoped, tag = 'scoped memory for tpu_custom_call.1']
    #allocation9 [shape = 'u8[2048]{0}', space=vmem, size = 0x800, scoped, tag = 'output window, operand 0, single buffered']
    %15 = vsyncpa [#allocation7], 0
    %s16 = scalar_lea.sflag [#allocation7], 1
    %17 = vsyncpa %s16, 0
    %18 = vsyncpa [#allocation8], 0
    loop: start=0, step=1, limit=6
    $region2: #{tpu_custom_call.1} parent=1 // loop_pre_header
      _
    $region3: #{tpu_custom_call.1} parent=1 // loop_header
      %s20 = sphi 0, %s24
      %p21 = scmp.ge.s32.totalorder %s20, 6
      %s27 = sphi 0, %s39
      %s28 = sphi 0, %s35
      %s29 = sphi 0, %s27
      %s30 = sphi 0, %s28
      %s31 = sphi 0, %s29
      %s32 = sphi 0, %s30
      %s42 = sphi 0, %s44
      %s45 = sphi 0, %s42
      %s46 = sphi 0, %s45
      %s62 = sphi 0, %s46
      %s68 = sphi 0, %s70
      %s71 = sphi 0, %s68
      %s72 = sphi 0, %s71
      %s88 = sphi 0, %s72
      %s94 = sphi 0, %s96
      %s97 = sphi 0, %s94
      %s98 = sphi 0, %s97
      %s114 = sphi 0, %s98
      %s120 = sphi 0, %s122
      %s123 = sphi 0, %s120
      %s124 = sphi 0, %s123
      %s140 = sphi 0, %s124
    $region4: #{tpu_custom_call.1} parent=1 // loop_header_branch
      %23 = sbr.rel (%p21) target = $region8
    $region5: #{tpu_custom_call.1} parent=1 // loop_body
      %s25 = ssub.s32 %s20, 1
      %s26 = ssub.s32 %s20, 2
      %s33 = sadd.s32 1, %s28
      %p34 = scmp.ge.s32.totalorder %s33, 4
      %s35 = scalar_select %p34, 0, %s33
      %s36 = sadd.s32 1, %s27
      %s37 = scalar_select %p34, %s36, %s27
      %p38 = scmp.ge.s32.totalorder %s37, 1
      %s39 = scalar_select %p38, 0, %s37
      %s40 = ssub.s32 %s27, %s39
      %p41 = scmp.eq.s32.totalorder %s40, 0
      %s43 = sadd.s32 %s42, 1
      %s44 = scalar_select %p41, %s42, %s43
      %p47 = pneg %p41
      %p48 = scmp.eq.s32.totalorder %s20, 3
      %p49 = por %p47, %p48
      %p50 = scmp.ne.s32.totalorder %s42, %s45
      %p51 = scmp.eq.s32.totalorder %s20, 0
      %p52 = por %p50, %p51
      %p53 = scmp.ne.s32.totalorder %s42, %s45
      %p54 = scmp.eq.s32.totalorder %s25, 3
      %p55 = por %p53, %p54
      %p56 = scmp.ne.s32.totalorder %s45, %s46
      %p57 = scmp.eq.s32.totalorder %s25, 0
      %p58 = por %p56, %p57
      %p59 = scmp.ne.s32.totalorder %s45, %s46
      %p60 = scmp.eq.s32.totalorder %s26, 3
      %p61 = por %p59, %p60
      %p63 = scmp.ne.s32.totalorder %s46, %s62
      %p64 = scmp.eq.s32.totalorder %s26, 0
      %p65 = por %p63, %p64
      %s66 = ssub.s32 %s28, %s35
      %p67 = scmp.eq.s32.totalorder %s66, 0
      %s69 = sadd.s32 %s68, 1
      %s70 = scalar_select %p67, %s68, %s69
      %p73 = pneg %p67
      %p74 = scmp.eq.s32.totalorder %s20, 3
      %p75 = por %p73, %p74
      %p76 = scmp.ne.s32.totalorder %s68, %s71
      %p77 = scmp.eq.s32.totalorder %s20, 0
      %p78 = por %p76, %p77
      %p79 = scmp.ne.s32.totalorder %s68, %s71
      %p80 = scmp.eq.s32.totalorder %s25, 3
      %p81 = por %p79, %p80
      %p82 = scmp.ne.s32.totalorder %s71, %s72
      %p83 = scmp.eq.s32.totalorder %s25, 0
      %p84 = por %p82, %p83
      %p85 = scmp.ne.s32.totalorder %s71, %s72
      %p86 = scmp.eq.s32.totalorder %s26, 3
      %p87 = por %p85, %p86
      %p89 = scmp.ne.s32.totalorder %s72, %s88
      %p90 = scmp.eq.s32.totalorder %s26, 0
      %p91 = por %p89, %p90
      %s92 = ssub.s32 %s28, %s35
      %p93 = scmp.eq.s32.totalorder %s92, 0
      %s95 = sadd.s32 %s94, 1
      %s96 = scalar_select %p93, %s94, %s95
      %p99 = pneg %p93
      %p100 = scmp.eq.s32.totalorder %s20, 3
      %p101 = por %p99, %p100
      %p102 = scmp.ne.s32.totalorder %s94, %s97
      %p103 = scmp.eq.s32.totalorder %s20, 0
      %p104 = por %p102, %p103
      %p105 = scmp.ne.s32.totalorder %s94, %s97
      %p106 = scmp.eq.s32.totalorder %s25, 3
      %p107 = por %p105, %p106
      %p108 = scmp.ne.s32.totalorder %s97, %s98
      %p109 = scmp.eq.s32.totalorder %s25, 0
      %p110 = por %p108, %p109
      %p111 = scmp.ne.s32.totalorder %s97, %s98
      %p112 = scmp.eq.s32.totalorder %s26, 3
      %p113 = por %p111, %p112
      %p115 = scmp.ne.s32.totalorder %s98, %s114
      %p116 = scmp.eq.s32.totalorder %s26, 0
      %p117 = por %p115, %p116
      %s118 = ssub.s32 %s27, %s39
      %p119 = scmp.eq.s32.totalorder %s118, 0
      %s121 = sadd.s32 %s120, 1
      %s122 = scalar_select %p119, %s120, %s121
      %p125 = pneg %p119
      %p126 = scmp.eq.s32.totalorder %s20, 3
      %p127 = por %p125, %p126
      %p128 = scmp.ne.s32.totalorder %s120, %s123
      %p129 = scmp.eq.s32.totalorder %s20, 0
      %p130 = por %p128, %p129
      %p131 = scmp.ne.s32.totalorder %s120, %s123
      %p132 = scmp.eq.s32.totalorder %s25, 3
      %p133 = por %p131, %p132
      %p134 = scmp.ne.s32.totalorder %s123, %s124
      %p135 = scmp.eq.s32.totalorder %s25, 0
      %p136 = por %p134, %p135
      %p137 = scmp.ne.s32.totalorder %s123, %s124
      %p138 = scmp.eq.s32.totalorder %s26, 3
      %p139 = por %p137, %p138
      %p141 = scmp.ne.s32.totalorder %s124, %s140
      %p142 = scmp.eq.s32.totalorder %s26, 0
      %p143 = por %p141, %p142
      %p144 = scmp.le.s32.totalorder 1, %s20
      %p145 = scmp.lt.s32.totalorder %s20, 5
      %p146 = pnand %p144, %p145
      %p147 = pneg %p146
      // Predicated region
      $region9: #{tpu_custom_call.1} parent=5 // pred_check
        _
      $region10: #{tpu_custom_call.1} parent=5 // pred_check_branch
        %149 = sbr.rel (%p146) target = $region12
      $region11: #{tpu_custom_call.1} parent=5 // pred_region
        %s150 = ssub.s32 %s20, 1
        // Predicated region
        $region13: #{tpu_custom_call.1} parent=11 // pred_check
          %p151 = pneg %p58
        $region14: #{tpu_custom_call.1} parent=11 // pred_check_branch
          %153 = sbr.rel (%p151) target = $region16
        $region15: #{tpu_custom_call.1} parent=11 // pred_region
          %p154 = scmp.lt.s32.totalorder %s29, 0
          %s155 = scalar_select %p154, %s29, 0
          %s156 = smul.addr %s155, 4
          %s157 = scalar_lea.vmem %s1, %s156
        $region16: #{tpu_custom_call.1} parent=11 // pred_fallthru
          _
      $region12: #{tpu_custom_call.1} parent=5 // pred_fallthru
        _
      %p158 = scmp.lt.s32.totalorder %s20, 4
      // Predicated region
      $region17: #{tpu_custom_call.1} parent=5 // pred_check
        %p159 = pneg %p158
      $region18: #{tpu_custom_call.1} parent=5 // pred_check_branch
        %161 = sbr.rel (%p159) target = $region20
      $region19: #{tpu_custom_call.1} parent=5 // pred_region
        // Predicated region
        $region21: #{tpu_custom_call.1} parent=19 // pred_check
          %p162 = pneg %p78
        $region22: #{tpu_custom_call.1} parent=19 // pred_check_branch
          %164 = sbr.rel (%p162) target = $region24
        $region23: #{tpu_custom_call.1} parent=19 // pred_region
          %s165 = sand.u32 %s68, 1
          %s166 = scalar_lea.sflag [#allocation7], %s165
          %s167 = sand.u32 %s68, 1
          %s168 = smul.addr %s167, 256
          %s169 = scalar_lea.vmem [#allocation6], %s168
          %s170 = smul.u32 16, %s28
          %s172 = ssub.s32 4096, 4096
          %173 = vsyncadd %s166, %s172
          %s174 = smul.addr %s170, 4
          %s175 = smul.addr %s174, 64
          %s176 = scalar_lea.hbm %s2, %s175
          %s177 = sshll.u32 %s169, 4
          %s178 = int_to_ptr.vmem [resolvable:$true] %s177
          %183 = dma.hbm_to_vmem [thread:$0]  %s176, 4096, %s178, %s166, 256, 256, 16
        $region24: #{tpu_custom_call.1} parent=19 // pred_fallthru
          _
        // Predicated region
        $region25: #{tpu_custom_call.1} parent=19 // pred_check
          %p184 = pneg %p104
        $region26: #{tpu_custom_call.1} parent=19 // pred_check_branch
          %186 = sbr.rel (%p184) target = $region28
        $region27: #{tpu_custom_call.1} parent=19 // pred_region
          %s187 = smul.u32 16, %s28
          %p188 = scmp.lt.s32.totalorder %s187, 63
          %s189 = scalar_select %p188, %s187, 63
          %s190 = smul.addr %s189, 8
          %s191 = scalar_lea.vmem %s3, %s190
          %s192 = smul.u32 16, %s28
        $region28: #{tpu_custom_call.1} parent=19 // pred_fallthru
          _
      $region20: #{tpu_custom_call.1} parent=5 // pred_fallthru
        _
      %p193 = scmp.le.s32.totalorder 1, %s20
      %p194 = scmp.lt.s32.totalorder %s20, 5
      %p195 = pnand %p193, %p194
      %p196 = pneg %p195
      // Predicated region
      $region29: #{tpu_custom_call.1} parent=5 // pred_check
        _
      $region30: #{tpu_custom_call.1} parent=5 // pred_check_branch
        %198 = sbr.rel (%p195) target = $region32
      $region31: #{tpu_custom_call.1} parent=5 // pred_region
        %s199 = ssub.s32 %s20, 1
        %s200 = sand.u32 %s71, 1
        %s201 = scalar_lea.sflag [#allocation7], %s200
        %s202 = sand.u32 %s71, 1
        %s203 = smul.addr %s202, 256
        %s204 = scalar_lea.vmem [#allocation6], %s203
        // Predicated region
        $region33: #{tpu_custom_call.1} parent=31 // pred_check
          %p205 = pneg %p84
        $region34: #{tpu_custom_call.1} parent=31 // pred_check_branch
          %207 = sbr.rel (%p205) target = $region36
        $region35: #{tpu_custom_call.1} parent=31 // pred_region
          %208 = dma.done %s201, 4096
        $region36: #{tpu_custom_call.1} parent=31 // pred_fallthru
          _
        %p209 = scmp.lt.s32.totalorder %s29, 0
        %s210 = scalar_select %p209, %s29, 0
        %s211 = smul.addr %s210, 4
        %s212 = scalar_lea.vmem %s1, %s211
        %p213 = pneg %p58
        %p214 = pneg %p55
        %s215 = sand.u32 %s71, 1
        %s216 = scalar_lea.sflag [#allocation7], %s215
        %s217 = sand.u32 %s71, 1
        %s218 = smul.addr %s217, 256
        %s219 = scalar_lea.vmem [#allocation6], %s218
        %p220 = pneg %p84
        %p221 = pneg %p81
        %s222 = smul.u32 16, %s30
        %p223 = scmp.lt.s32.totalorder %s222, 63
        %s224 = scalar_select %p223, %s222, 63
        %s225 = smul.addr %s224, 8
        %s226 = scalar_lea.vmem %s3, %s225
        %p227 = pneg %p110
        %p228 = pneg %p107
        %p229 = pneg %p136
        %p230 = pneg %p133
        %p231 = scmp.lt.s32.totalorder %s29, 0
        %s232 = scalar_select %p231, %s29, 0
        %s233 = smul.addr %s232, 4
        %s234 = scalar_lea.vmem %s1, %s233
        %s235 = smul.u32 16, %s30
        %s236 = smul.u32 16, %s30
        %p237 = scmp.lt.s32.totalorder %s236, 63
        %s238 = scalar_select %p237, %s236, 63
        %s239 = smul.addr %s238, 8
        %s240 = scalar_lea.vmem %s3, %s239
        %s241 = smul.u32 16, %s30
        %p243 = scmp.eq.s32.totalorder %s30, 0
        // Predicated region
        $region37: #{tpu_custom_call.1} parent=31 // pred_check
          %p244 = pneg %p243
        $region38: #{tpu_custom_call.1} parent=31 // pred_check_branch
          %246 = sbr.rel (%p244) target = $region40
        $region39: #{tpu_custom_call.1} parent=31 // pred_region
          %247 = vst [vmem:[#allocation2] sm:$0x1] 0.0
          %248 = vst [vmem:[#allocation3] sm:$0x1] 0.0
        $region40: #{tpu_custom_call.1} parent=31 // pred_fallthru
          _
        %v249 = vld [vmem:[%s234] sm:$0xf]
        %v250 = vld [vmem:[%s234 + $0x4] sm:$0xf]
        %v251 = vld [vmem:[%s234 + $0x8] sm:$0xf]
        %v252 = vld [vmem:[%s234 + $0xc] sm:$0xf]
        %v253 = vld [vmem:[%s234 + $0x10] sm:$0xf]
        %v254 = vld [vmem:[%s234 + $0x14] sm:$0xf]
        %v255 = vld [vmem:[%s234 + $0x18] sm:$0xf]
        %v256 = vld [vmem:[%s234 + $0x1c] sm:$0xf]
        %v257 = vld [vmem:[%s234 + $0x20] sm:$0xf]
        %v258 = vld [vmem:[%s234 + $0x24] sm:$0xf]
        %v259 = vld [vmem:[%s234 + $0x28] sm:$0xf]
        %v260 = vld [vmem:[%s234 + $0x2c] sm:$0xf]
        %v261 = vld [vmem:[%s234 + $0x30] sm:$0xf]
        %v262 = vld [vmem:[%s234 + $0x34] sm:$0xf]
        %v263 = vld [vmem:[%s234 + $0x38] sm:$0xf]
        %v264 = vld [vmem:[%s234 + $0x3c] sm:$0xf]
        %v265 = vld [vmem:[%s234 + $0x40] sm:$0xf]
        %v266 = vld [vmem:[%s234 + $0x44] sm:$0xf]
        %v267 = vld [vmem:[%s234 + $0x48] sm:$0xf]
        %v268 = vld [vmem:[%s234 + $0x4c] sm:$0xf]
        %v269 = vld [vmem:[%s234 + $0x50] sm:$0xf]
        %v270 = vld [vmem:[%s234 + $0x54] sm:$0xf]
        %v271 = vld [vmem:[%s234 + $0x58] sm:$0xf]
        %v272 = vld [vmem:[%s234 + $0x5c] sm:$0xf]
        %v273 = vld [vmem:[%s234 + $0x60] sm:$0xf]
        %v274 = vld [vmem:[%s234 + $0x64] sm:$0xf]
        %v275 = vld [vmem:[%s234 + $0x68] sm:$0xf]
        %v276 = vld [vmem:[%s234 + $0x6c] sm:$0xf]
        %v277 = vld [vmem:[%s234 + $0x70] sm:$0xf]
        %v278 = vld [vmem:[%s234 + $0x74] sm:$0xf]
        %v279 = vld [vmem:[%s234 + $0x78] sm:$0xf]
        %v280 = vld [vmem:[%s234 + $0x7c] sm:$0xf]
        %v281 = vld [vmem:[%s234 + $0x80] sm:$0xf]
        %v282 = vld [vmem:[%s234 + $0x84] sm:$0xf]
        %v283 = vld [vmem:[%s234 + $0x88] sm:$0xf]
        %v284 = vld [vmem:[%s234 + $0x8c] sm:$0xf]
        %v285 = vld [vmem:[%s234 + $0x90] sm:$0xf]
        %v286 = vld [vmem:[%s234 + $0x94] sm:$0xf]
        %v287 = vld [vmem:[%s234 + $0x98] sm:$0xf]
        %v288 = vld [vmem:[%s234 + $0x9c] sm:$0xf]
        %v289 = vld [vmem:[%s234 + $0xa0] sm:$0xf]
        %v290 = vld [vmem:[%s234 + $0xa4] sm:$0xf]
        %v291 = vld [vmem:[%s234 + $0xa8] sm:$0xf]
        %v292 = vld [vmem:[%s234 + $0xac] sm:$0xf]
        %v293 = vld [vmem:[%s234 + $0xb0] sm:$0xf]
        %v294 = vld [vmem:[%s234 + $0xb4] sm:$0xf]
        %v295 = vld [vmem:[%s234 + $0xb8] sm:$0xf]
        %v296 = vld [vmem:[%s234 + $0xbc] sm:$0xf]
        %v297 = vld [vmem:[%s234 + $0xc0] sm:$0xf]
        %v298 = vld [vmem:[%s234 + $0xc4] sm:$0xf]
        %v299 = vld [vmem:[%s234 + $0xc8] sm:$0xf]
        %v300 = vld [vmem:[%s234 + $0xcc] sm:$0xf]
        %v301 = vld [vmem:[%s234 + $0xd0] sm:$0xf]
        %v302 = vld [vmem:[%s234 + $0xd4] sm:$0xf]
        %v303 = vld [vmem:[%s234 + $0xd8] sm:$0xf]
        %v304 = vld [vmem:[%s234 + $0xdc] sm:$0xf]
        %v305 = vld [vmem:[%s234 + $0xe0] sm:$0xf]
        %v306 = vld [vmem:[%s234 + $0xe4] sm:$0xf]
        %v307 = vld [vmem:[%s234 + $0xe8] sm:$0xf]
        %v308 = vld [vmem:[%s234 + $0xec] sm:$0xf]
        %v309 = vld [vmem:[%s234 + $0xf0] sm:$0xf]
        %v310 = vld [vmem:[%s234 + $0xf4] sm:$0xf]
        %v311 = vld [vmem:[%s234 + $0xf8] sm:$0xf]
        %v312 = vld [vmem:[%s234 + $0xfc] sm:$0xf]
        %v313 = vld [vmem:[%s204] sm:$0xff]
        %v314 = vld [vmem:[%s204 + $0x8] sm:$0xff]
        %v315 = vld [vmem:[%s204 + $0x10] sm:$0xff]
        %v316 = vld [vmem:[%s204 + $0x18] sm:$0xff]
        %v317 = vld [vmem:[%s204 + $0x20] sm:$0xff]
        %v318 = vld [vmem:[%s204 + $0x28] sm:$0xff]
        %v319 = vld [vmem:[%s204 + $0x30] sm:$0xff]
        %v320 = vld [vmem:[%s204 + $0x38] sm:$0xff]
        %v321 = vld [vmem:[%s204 + $0x40] sm:$0xff]
        %v322 = vld [vmem:[%s204 + $0x48] sm:$0xff]
        %v323 = vld [vmem:[%s204 + $0x50] sm:$0xff]
        %v324 = vld [vmem:[%s204 + $0x58] sm:$0xff]
        %v325 = vld [vmem:[%s204 + $0x60] sm:$0xff]
        %v326 = vld [vmem:[%s204 + $0x68] sm:$0xff]
        %v327 = vld [vmem:[%s204 + $0x70] sm:$0xff]
        %v328 = vld [vmem:[%s204 + $0x78] sm:$0xff]
        %v329 = vld [vmem:[%s204 + $0x80] sm:$0xff]
        %v330 = vld [vmem:[%s204 + $0x88] sm:$0xff]
        %v331 = vld [vmem:[%s204 + $0x90] sm:$0xff]
        %v332 = vld [vmem:[%s204 + $0x98] sm:$0xff]
        %v333 = vld [vmem:[%s204 + $0xa0] sm:$0xff]
        %v334 = vld [vmem:[%s204 + $0xa8] sm:$0xff]
        %v335 = vld [vmem:[%s204 + $0xb0] sm:$0xff]
        %v336 = vld [vmem:[%s204 + $0xb8] sm:$0xff]
        %v337 = vld [vmem:[%s204 + $0xc0] sm:$0xff]
        %v338 = vld [vmem:[%s204 + $0xc8] sm:$0xff]
        %v339 = vld [vmem:[%s204 + $0xd0] sm:$0xff]
        %v340 = vld [vmem:[%s204 + $0xd8] sm:$0xff]
        %v341 = vld [vmem:[%s204 + $0xe0] sm:$0xff]
        %v342 = vld [vmem:[%s204 + $0xe8] sm:$0xff]
        %v343 = vld [vmem:[%s204 + $0xf0] sm:$0xff]
        %v344 = vld [vmem:[%s204 + $0xf8] sm:$0xff]
        %v377 = vunpack.c.l.b16 %v313
        %v378 = vunpack.c.h.b16 %v313
        %v379 = vunpack.c.l.b16 %v314
        %v380 = vunpack.c.h.b16 %v314
        %v381 = vunpack.c.l.b16 %v315
        %v382 = vunpack.c.h.b16 %v315
        %v383 = vunpack.c.l.b16 %v316
        %v384 = vunpack.c.h.b16 %v316
        %v385 = vunpack.c.l.b16 %v317
        %v386 = vunpack.c.h.b16 %v317
        %v387 = vunpack.c.l.b16 %v318
        %v388 = vunpack.c.h.b16 %v318
        %v389 = vunpack.c.l.b16 %v319
        %v390 = vunpack.c.h.b16 %v319
        %v391 = vunpack.c.l.b16 %v320
        %v392 = vunpack.c.h.b16 %v320
        %v393 = vunpack.c.l.b16 %v321
        %v394 = vunpack.c.h.b16 %v321
        %v395 = vunpack.c.l.b16 %v322
        %v396 = vunpack.c.h.b16 %v322
        %v397 = vunpack.c.l.b16 %v323
        %v398 = vunpack.c.h.b16 %v323
        %v399 = vunpack.c.l.b16 %v324
        %v400 = vunpack.c.h.b16 %v324
        %v401 = vunpack.c.l.b16 %v325
        %v402 = vunpack.c.h.b16 %v325
        %v403 = vunpack.c.l.b16 %v326
        %v404 = vunpack.c.h.b16 %v326
        %v405 = vunpack.c.l.b16 %v327
        %v406 = vunpack.c.h.b16 %v327
        %v407 = vunpack.c.l.b16 %v328
        %v408 = vunpack.c.h.b16 %v328
        %v409 = vunpack.c.l.b16 %v329
        %v410 = vunpack.c.h.b16 %v329
        %v411 = vunpack.c.l.b16 %v330
        %v412 = vunpack.c.h.b16 %v330
        %v413 = vunpack.c.l.b16 %v331
        %v414 = vunpack.c.h.b16 %v331
        %v415 = vunpack.c.l.b16 %v332
        %v416 = vunpack.c.h.b16 %v332
        %v417 = vunpack.c.l.b16 %v333
        %v418 = vunpack.c.h.b16 %v333
        %v419 = vunpack.c.l.b16 %v334
        %v420 = vunpack.c.h.b16 %v334
        %v421 = vunpack.c.l.b16 %v335
        %v422 = vunpack.c.h.b16 %v335
        %v423 = vunpack.c.l.b16 %v336
        %v424 = vunpack.c.h.b16 %v336
        %v425 = vunpack.c.l.b16 %v337
        %v426 = vunpack.c.h.b16 %v337
        %v427 = vunpack.c.l.b16 %v338
        %v428 = vunpack.c.h.b16 %v338
        %v429 = vunpack.c.l.b16 %v339
        %v430 = vunpack.c.h.b16 %v339
        %v431 = vunpack.c.l.b16 %v340
        %v432 = vunpack.c.h.b16 %v340
        %v433 = vunpack.c.l.b16 %v341
        %v434 = vunpack.c.h.b16 %v341
        %v435 = vunpack.c.l.b16 %v342
        %v436 = vunpack.c.h.b16 %v342
        %v437 = vunpack.c.l.b16 %v343
        %v438 = vunpack.c.h.b16 %v343
        %v439 = vunpack.c.l.b16 %v344
        %v440 = vunpack.c.h.b16 %v344
        %v441 = vpack.c.b16 %v381, %v377
        %v442 = vpack.c.b16 %v382, %v378
        %v443 = vpack.c.b16 %v383, %v379
        %v444 = vpack.c.b16 %v384, %v380
        %v445 = vpack.c.b16 %v389, %v385
        %v446 = vpack.c.b16 %v390, %v386
        %v447 = vpack.c.b16 %v391, %v387
        %v448 = vpack.c.b16 %v392, %v388
        %v449 = vpack.c.b16 %v397, %v393
        %v450 = vpack.c.b16 %v398, %v394
        %v451 = vpack.c.b16 %v399, %v395
        %v452 = vpack.c.b16 %v400, %v396
        %v453 = vpack.c.b16 %v405, %v401
        %v454 = vpack.c.b16 %v406, %v402
        %v455 = vpack.c.b16 %v407, %v403
        %v456 = vpack.c.b16 %v408, %v404
        %v457 = vpack.c.b16 %v413, %v409
        %v458 = vpack.c.b16 %v414, %v410
        %v459 = vpack.c.b16 %v415, %v411
        %v460 = vpack.c.b16 %v416, %v412
        %v461 = vpack.c.b16 %v421, %v417
        %v462 = vpack.c.b16 %v422, %v418
        %v463 = vpack.c.b16 %v423, %v419
        %v464 = vpack.c.b16 %v424, %v420
        %v465 = vpack.c.b16 %v429, %v425
        %v466 = vpack.c.b16 %v430, %v426
        %v467 = vpack.c.b16 %v431, %v427
        %v468 = vpack.c.b16 %v432, %v428
        %v469 = vpack.c.b16 %v437, %v433
        %v470 = vpack.c.b16 %v438, %v434
        %v471 = vpack.c.b16 %v439, %v435
        %v472 = vpack.c.b16 %v440, %v436
        %v569 = vunpack.c.l.b16 %v249
        %v570 = vunpack.c.l.b16 %v250
        %v571 = vunpack.c.l.b16 %v251
        %v572 = vunpack.c.l.b16 %v252
        %v573 = vunpack.c.l.b16 %v253
        %v574 = vunpack.c.l.b16 %v254
        %v575 = vunpack.c.l.b16 %v255
        %v576 = vunpack.c.l.b16 %v256
        %v577 = vunpack.c.l.b16 %v257
        %v578 = vunpack.c.l.b16 %v258
        %v579 = vunpack.c.l.b16 %v259
        %v580 = vunpack.c.l.b16 %v260
        %v581 = vunpack.c.l.b16 %v261
        %v582 = vunpack.c.l.b16 %v262
        %v583 = vunpack.c.l.b16 %v263
        %v584 = vunpack.c.l.b16 %v264
        %v585 = vunpack.c.l.b16 %v265
        %v586 = vunpack.c.l.b16 %v266
        %v587 = vunpack.c.l.b16 %v267
        %v588 = vunpack.c.l.b16 %v268
        %v589 = vunpack.c.l.b16 %v269
        %v590 = vunpack.c.l.b16 %v270
        %v591 = vunpack.c.l.b16 %v271
        %v592 = vunpack.c.l.b16 %v272
        %v593 = vunpack.c.l.b16 %v273
        %v594 = vunpack.c.l.b16 %v274
        %v595 = vunpack.c.l.b16 %v275
        %v596 = vunpack.c.l.b16 %v276
        %v597 = vunpack.c.l.b16 %v277
        %v598 = vunpack.c.l.b16 %v278
        %v599 = vunpack.c.l.b16 %v279
        %v600 = vunpack.c.l.b16 %v280
        %v601 = vunpack.c.l.b16 %v281
        %v602 = vunpack.c.l.b16 %v282
        %v603 = vunpack.c.l.b16 %v283
        %v604 = vunpack.c.l.b16 %v284
        %v605 = vunpack.c.l.b16 %v285
        %v606 = vunpack.c.l.b16 %v286
        %v607 = vunpack.c.l.b16 %v287
        %v608 = vunpack.c.l.b16 %v288
        %v609 = vunpack.c.l.b16 %v289
        %v610 = vunpack.c.l.b16 %v290
        %v611 = vunpack.c.l.b16 %v291
        %v612 = vunpack.c.l.b16 %v292
        %v613 = vunpack.c.l.b16 %v293
        %v614 = vunpack.c.l.b16 %v294
        %v615 = vunpack.c.l.b16 %v295
        %v616 = vunpack.c.l.b16 %v296
        %v617 = vunpack.c.l.b16 %v297
        %v618 = vunpack.c.l.b16 %v298
        %v619 = vunpack.c.l.b16 %v299
        %v620 = vunpack.c.l.b16 %v300
        %v621 = vunpack.c.l.b16 %v301
        %v622 = vunpack.c.l.b16 %v302
        %v623 = vunpack.c.l.b16 %v303
        %v624 = vunpack.c.l.b16 %v304
        %v625 = vunpack.c.l.b16 %v305
        %v626 = vunpack.c.l.b16 %v306
        %v627 = vunpack.c.l.b16 %v307
        %v628 = vunpack.c.l.b16 %v308
        %v629 = vunpack.c.l.b16 %v309
        %v630 = vunpack.c.l.b16 %v310
        %v631 = vunpack.c.l.b16 %v311
        %v632 = vunpack.c.l.b16 %v312
        %v633 = vpack.c.b16 %v570, %v569
        %v634 = vpack.c.b16 %v572, %v571
        %v635 = vpack.c.b16 %v574, %v573
        %v636 = vpack.c.b16 %v576, %v575
        %v637 = vpack.c.b16 %v578, %v577
        %v638 = vpack.c.b16 %v580, %v579
        %v639 = vpack.c.b16 %v582, %v581
        %v640 = vpack.c.b16 %v584, %v583
        %v641 = vpack.c.b16 %v586, %v585
        %v642 = vpack.c.b16 %v588, %v587
        %v643 = vpack.c.b16 %v590, %v589
        %v644 = vpack.c.b16 %v592, %v591
        %v645 = vpack.c.b16 %v594, %v593
        %v646 = vpack.c.b16 %v596, %v595
        %v647 = vpack.c.b16 %v598, %v597
        %v648 = vpack.c.b16 %v600, %v599
        %v649 = vpack.c.b16 %v602, %v601
        %v650 = vpack.c.b16 %v604, %v603
        %v651 = vpack.c.b16 %v606, %v605
        %v652 = vpack.c.b16 %v608, %v607
        %v653 = vpack.c.b16 %v610, %v609
        %v654 = vpack.c.b16 %v612, %v611
        %v655 = vpack.c.b16 %v614, %v613
        %v656 = vpack.c.b16 %v616, %v615
        %v657 = vpack.c.b16 %v618, %v617
        %v658 = vpack.c.b16 %v620, %v619
        %v659 = vpack.c.b16 %v622, %v621
        %v660 = vpack.c.b16 %v624, %v623
        %v661 = vpack.c.b16 %v626, %v625
        %v662 = vpack.c.b16 %v628, %v627
        %v663 = vpack.c.b16 %v630, %v629
        %v664 = vpack.c.b16 %v632, %v631
        %697 = vmatprep.subr.bf16.mxu0 0
        %698 = vmatpush1.bf16.msra.mxu0 %v633
        %699 = vmatprep.subr.bf16.mxu0 0
        %700 = vmatpush1.bf16.msra.mxu0 %v634
        %701 = vmatprep.subr.bf16.mxu0 0
        %702 = vmatpush1.bf16.msra.mxu0 %v635
        %703 = vmatprep.subr.bf16.mxu0 0
        %704 = vmatpush1.bf16.msra.mxu0 %v636
        %705 = vmatprep.subr.bf16.mxu0 0
        %706 = vmatpush1.bf16.msra.mxu0 %v637
        %707 = vmatprep.subr.bf16.mxu0 0
        %708 = vmatpush1.bf16.msra.mxu0 %v638
        %709 = vmatprep.subr.bf16.mxu0 0
        %710 = vmatpush1.bf16.msra.mxu0 %v639
        %711 = vmatprep.subr.bf16.mxu0 0
        %712 = vmatpush1.bf16.msra.mxu0 %v640
        %713 = vmatprep.subr.bf16.mxu0 0
        %714 = vmatpush1.bf16.msra.mxu0 %v641
        %715 = vmatprep.subr.bf16.mxu0 0
        %716 = vmatpush1.bf16.msra.mxu0 %v642
        %717 = vmatprep.subr.bf16.mxu0 0
        %718 = vmatpush1.bf16.msra.mxu0 %v643
        %719 = vmatprep.subr.bf16.mxu0 0
        %720 = vmatpush1.bf16.msra.mxu0 %v644
        %721 = vmatprep.subr.bf16.mxu0 0
        %722 = vmatpush1.bf16.msra.mxu0 %v645
        %723 = vmatprep.subr.bf16.mxu0 0
        %724 = vmatpush1.bf16.msra.mxu0 %v646
        %725 = vmatprep.subr.bf16.mxu0 0
        %726 = vmatpush1.bf16.msra.mxu0 %v647
        %727 = vmatprep.subr.bf16.mxu0 0
        %728 = vmatpush1.bf16.msra.mxu0 %v648
        %729 = vmatprep.mubr.bf16.mxu0 %v442
        %730 = vmatmul.mubr.bf16.gmra.mrb[0].mxu0 %v441
        %v731 = vpop.f32.mrb[0].mxu0
        %v732 = vadd.f32 0.0, %v731
        %v733 = vpop.f32.mrb[0].mxu0
        %v734 = vpop.f32.mrb[0].mxu0
        %v735 = vadd.f32 0.0, %v734
        %v736 = vpop.f32.mrb[0].mxu0
        %737 = vmatprep.mubr.bf16.mxu0 %v446
        %738 = vmatmul.mubr.bf16.gmra.mrb[0].mxu0 %v445
        %v739 = vpop.f32.mrb[0].mxu0
        %v740 = vadd.f32 0.0, %v739
        %v741 = vpop.f32.mrb[0].mxu0
        %v742 = vpop.f32.mrb[0].mxu0
        %v743 = vadd.f32 0.0, %v742
        %v744 = vpop.f32.mrb[0].mxu0
        %745 = vmatprep.mubr.bf16.mxu0 %v450
        %746 = vmatmul.mubr.bf16.gmra.mrb[0].mxu0 %v449
        %v747 = vpop.f32.mrb[0].mxu0
        %v748 = vadd.f32 0.0, %v747
        %v749 = vpop.f32.mrb[0].mxu0
        %v750 = vpop.f32.mrb[0].mxu0
        %v751 = vadd.f32 0.0, %v750
        %v752 = vpop.f32.mrb[0].mxu0
        %753 = vmatprep.mubr.bf16.mxu0 %v454
        %754 = vmatmul.mubr.bf16.gmra.mrb[0].mxu0 %v453
        %v755 = vpop.f32.mrb[0].mxu0
        %v756 = vadd.f32 0.0, %v755
        %v757 = vpop.f32.mrb[0].mxu0
        %v758 = vpop.f32.mrb[0].mxu0
        %v759 = vadd.f32 0.0, %v758
        %v760 = vpop.f32.mrb[0].mxu0
        %761 = vmatprep.mubr.bf16.mxu0 %v458
        %762 = vmatmul.mubr.bf16.gmra.mrb[0].mxu0 %v457
        %v763 = vpop.f32.mrb[0].mxu0
        %v764 = vadd.f32 0.0, %v763
        %v765 = vpop.f32.mrb[0].mxu0
        %v766 = vpop.f32.mrb[0].mxu0
        %v767 = vadd.f32 0.0, %v766
        %v768 = vpop.f32.mrb[0].mxu0
        %769 = vmatprep.mubr.bf16.mxu0 %v462
        %770 = vmatmul.mubr.bf16.gmra.mrb[0].mxu0 %v461
        %v771 = vpop.f32.mrb[0].mxu0
        %v772 = vadd.f32 0.0, %v771
        %v773 = vpop.f32.mrb[0].mxu0
        %v774 = vpop.f32.mrb[0].mxu0
        %v775 = vadd.f32 0.0, %v774
        %v776 = vpop.f32.mrb[0].mxu0
        %777 = vmatprep.mubr.bf16.mxu0 %v466
        %778 = vmatmul.mubr.bf16.gmra.mrb[0].mxu0 %v465
        %v779 = vpop.f32.mrb[0].mxu0
        %v780 = vadd.f32 0.0, %v779
        %v781 = vpop.f32.mrb[0].mxu0
        %v782 = vpop.f32.mrb[0].mxu0
        %v783 = vadd.f32 0.0, %v782
        %v784 = vpop.f32.mrb[0].mxu0
        %785 = vmatprep.mubr.bf16.mxu0 %v470
        %786 = vmatmul.mubr.bf16.gmra.mrb[0].mxu0 %v469
        %v787 = vpop.f32.mrb[0].mxu0
        %v788 = vadd.f32 0.0, %v787
        %v789 = vpop.f32.mrb[0].mxu0
        %v790 = vpop.f32.mrb[0].mxu0
        %v791 = vadd.f32 0.0, %v790
        %v792 = vpop.f32.mrb[0].mxu0
        %793 = vdwg.mxu0
        %794 = vmatprep.subr.bf16.mxu0 0
        %795 = vmatpush1.bf16.msra.mxu0 %v649
        %796 = vmatprep.subr.bf16.mxu0 0
        %797 = vmatpush1.bf16.msra.mxu0 %v650
        %798 = vmatprep.subr.bf16.mxu0 0
        %799 = vmatpush1.bf16.msra.mxu0 %v651
        %800 = vmatprep.subr.bf16.mxu0 0
        %801 = vmatpush1.bf16.msra.mxu0 %v652
        %802 = vmatprep.subr.bf16.mxu0 0
        %803 = vmatpush1.bf16.msra.mxu0 %v653
        %804 = vmatprep.subr.bf16.mxu0 0
        %805 = vmatpush1.bf16.msra.mxu0 %v654
        %806 = vmatprep.subr.bf16.mxu0 0
        %807 = vmatpush1.bf16.msra.mxu0 %v655
        %808 = vmatprep.subr.bf16.mxu0 0
        %809 = vmatpush1.bf16.msra.mxu0 %v656
        %810 = vmatprep.subr.bf16.mxu0 0
        %811 = vmatpush1.bf16.msra.mxu0 %v657
        %812 = vmatprep.subr.bf16.mxu0 0
        %813 = vmatpush1.bf16.msra.mxu0 %v658
        %814 = vmatprep.subr.bf16.mxu0 0
        %815 = vmatpush1.bf16.msra.mxu0 %v659
        %816 = vmatprep.subr.bf16.mxu0 0
        %817 = vmatpush1.bf16.msra.mxu0 %v660
        %818 = vmatprep.subr.bf16.mxu0 0
        %819 = vmatpush1.bf16.msra.mxu0 %v661
        %820 = vmatprep.subr.bf16.mxu0 0
        %821 = vmatpush1.bf16.msra.mxu0 %v662
        %822 = vmatprep.subr.bf16.mxu0 0
        %823 = vmatpush1.bf16.msra.mxu0 %v663
        %824 = vmatprep.subr.bf16.mxu0 0
        %825 = vmatpush1.bf16.msra.mxu0 %v664
        %826 = vmatprep.mubr.bf16.mxu0 %v444
        %827 = vmatmul.mubr.bf16.gmra.mrb[0].mxu0 %v443
        %v828 = vpop.f32.mrb[0].mxu0
        %v829 = vadd.f32 %v732, %v828
        %v830 = vpop.f32.mrb[0].mxu0
        %v831 = vpop.f32.mrb[0].mxu0
        %v832 = vadd.f32 %v735, %v831
        %v833 = vpop.f32.mrb[0].mxu0
        %834 = vmatprep.mubr.bf16.mxu0 %v448
        %835 = vmatmul.mubr.bf16.gmra.mrb[0].mxu0 %v447
        %v836 = vpop.f32.mrb[0].mxu0
        %v837 = vadd.f32 %v740, %v836
        %v838 = vpop.f32.mrb[0].mxu0
        %v839 = vpop.f32.mrb[0].mxu0
        %v840 = vadd.f32 %v743, %v839
        %v841 = vpop.f32.mrb[0].mxu0
        %842 = vmatprep.mubr.bf16.mxu0 %v452
        %843 = vmatmul.mubr.bf16.gmra.mrb[0].mxu0 %v451
        %v844 = vpop.f32.mrb[0].mxu0
        %v845 = vadd.f32 %v748, %v844
        %v846 = vpop.f32.mrb[0].mxu0
        %v847 = vpop.f32.mrb[0].mxu0
        %v848 = vadd.f32 %v751, %v847
        %v849 = vpop.f32.mrb[0].mxu0
        %850 = vmatprep.mubr.bf16.mxu0 %v456
        %851 = vmatmul.mubr.bf16.gmra.mrb[0].mxu0 %v455
        %v852 = vpop.f32.mrb[0].mxu0
        %v853 = vadd.f32 %v756, %v852
        %v854 = vpop.f32.mrb[0].mxu0
        %v855 = vpop.f32.mrb[0].mxu0
        %v856 = vadd.f32 %v759, %v855
        %v857 = vpop.f32.mrb[0].mxu0
        %858 = vmatprep.mubr.bf16.mxu0 %v460
        %859 = vmatmul.mubr.bf16.gmra.mrb[0].mxu0 %v459
        %v860 = vpop.f32.mrb[0].mxu0
        %v861 = vadd.f32 %v764, %v860
        %v862 = vpop.f32.mrb[0].mxu0
        %v863 = vpop.f32.mrb[0].mxu0
        %v864 = vadd.f32 %v767, %v863
        %v865 = vpop.f32.mrb[0].mxu0
        %866 = vmatprep.mubr.bf16.mxu0 %v464
        %867 = vmatmul.mubr.bf16.gmra.mrb[0].mxu0 %v463
        %v868 = vpop.f32.mrb[0].mxu0
        %v869 = vadd.f32 %v772, %v868
        %v870 = vpop.f32.mrb[0].mxu0
        %v871 = vpop.f32.mrb[0].mxu0
        %v872 = vadd.f32 %v775, %v871
        %v873 = vpop.f32.mrb[0].mxu0
        %874 = vmatprep.mubr.bf16.mxu0 %v468
        %875 = vmatmul.mubr.bf16.gmra.mrb[0].mxu0 %v467
        %v876 = vpop.f32.mrb[0].mxu0
        %v877 = vadd.f32 %v780, %v876
        %v878 = vpop.f32.mrb[0].mxu0
        %v879 = vpop.f32.mrb[0].mxu0
        %v880 = vadd.f32 %v783, %v879
        %v881 = vpop.f32.mrb[0].mxu0
        %882 = vmatprep.mubr.bf16.mxu0 %v472
        %883 = vmatmul.mubr.bf16.gmra.mrb[0].mxu0 %v471
        %v884 = vpop.f32.mrb[0].mxu0
        %v885 = vadd.f32 %v788, %v884
        %v886 = vpop.f32.mrb[0].mxu0
        %v887 = vpop.f32.mrb[0].mxu0
        %v888 = vadd.f32 %v791, %v887
        %v889 = vpop.f32.mrb[0].mxu0
        %890 = vdwg.mxu0
        %s891 = smul.u32 %s30, 128
        %s892 = sshra.s32 %s891, 3
        %s893 = sand.u32 %s891, 7
        %s894 = smul.addr %s892, 4
        %s895 = scalar_lea.vmem %s234, %s894
        %v896 = vld [vmem:[%s895] sm:$0xf]
        %v897 = vld [vmem:[%s895 + $0x4] sm:$0xf]
        %v898 = vld [vmem:[%s895 + $0x8] sm:$0xf]
        %v899 = vld [vmem:[%s895 + $0xc] sm:$0xf]
        %v900 = vld [vmem:[%s895 + $0x10] sm:$0xf]
        %v901 = vld [vmem:[%s895 + $0x14] sm:$0xf]
        %v902 = vld [vmem:[%s895 + $0x18] sm:$0xf]
        %v903 = vld [vmem:[%s895 + $0x1c] sm:$0xf]
        %v904 = vld [vmem:[%s895 + $0x20] sm:$0xf]
        %v905 = vld [vmem:[%s895 + $0x24] sm:$0xf]
        %v906 = vld [vmem:[%s895 + $0x28] sm:$0xf]
        %v907 = vld [vmem:[%s895 + $0x2c] sm:$0xf]
        %v908 = vld [vmem:[%s895 + $0x30] sm:$0xf]
        %v909 = vld [vmem:[%s895 + $0x34] sm:$0xf]
        %v910 = vld [vmem:[%s895 + $0x38] sm:$0xf]
        %v911 = vld [vmem:[%s895 + $0x3c] sm:$0xf]
        %v912 = vunpack.c.l.bf16 %v896
        %v913 = vunpack.c.l.bf16 %v897
        %v914 = vunpack.c.l.bf16 %v898
        %v915 = vunpack.c.l.bf16 %v899
        %v916 = vunpack.c.l.bf16 %v900
        %v917 = vunpack.c.l.bf16 %v901
        %v918 = vunpack.c.l.bf16 %v902
        %v919 = vunpack.c.l.bf16 %v903
        %v920 = vunpack.c.l.bf16 %v904
        %v921 = vunpack.c.l.bf16 %v905
        %v922 = vunpack.c.l.bf16 %v906
        %v923 = vunpack.c.l.bf16 %v907
        %v924 = vunpack.c.l.bf16 %v908
        %v925 = vunpack.c.l.bf16 %v909
        %v926 = vunpack.c.l.bf16 %v910
        %v927 = vunpack.c.l.bf16 %v911
        %v928 = vld [vmem:[#allocation2] sm:$0x1]
        %v929 = vmul.f32 %v912, %v829
        %v930 = vmul.f32 %v913, %v832
        %v931 = vmul.f32 %v914, %v837
        %v932 = vmul.f32 %v915, %v840
        %v933 = vmul.f32 %v916, %v845
        %v934 = vmul.f32 %v917, %v848
        %v935 = vmul.f32 %v918, %v853
        %v936 = vmul.f32 %v919, %v856
        %v937 = vmul.f32 %v920, %v861
        %v938 = vmul.f32 %v921, %v864
        %v939 = vmul.f32 %v922, %v869
        %v940 = vmul.f32 %v923, %v872
        %v941 = vmul.f32 %v924, %v877
        %v942 = vmul.f32 %v925, %v880
        %v943 = vmul.f32 %v926, %v885
        %v944 = vmul.f32 %v927, %v888
        %v945 = vadd.f32 %v929, %v930
        %v946 = vadd.f32 %v945, %v931
        %v947 = vadd.f32 %v946, %v932
        %v948 = vadd.f32 %v947, %v933
        %v949 = vadd.f32 %v948, %v934
        %v950 = vadd.f32 %v949, %v935
        %v951 = vadd.f32 %v950, %v936
        %v952 = vadd.f32 %v951, %v937
        %v953 = vadd.f32 %v952, %v938
        %v954 = vadd.f32 %v953, %v939
        %v955 = vadd.f32 %v954, %v940
        %v956 = vadd.f32 %v955, %v941
        %v957 = vadd.f32 %v956, %v942
        %v958 = vadd.f32 %v957, %v943
        %v959 = vadd.f32 %v958, %v944
        %v960 = vrot.slane %v959, 4
        %v961 = vadd.f32 %v959, %v960
        %v962 = vrot.slane %v961, 2
        %v963 = vadd.f32 %v961, %v962
        %v964 = vrot.slane %v963, 1
        %v965 = vadd.f32 %v963, %v964
        %v966 = vadd.f32 %v928, %v965
        %967 = vst [vmem:[#allocation2] sm:$0x1] %v966
        %v968 = vld [vmem:[#allocation3] sm:$0x1]
        %v969 = vld [vmem:[%s240] sm:$0xff]
        %v970 = vld [vmem:[%s240 + $0x8] sm:$0xff]
        %v971 = vld [vmem:[%s240 + $0x10] sm:$0xff]
        %v972 = vld [vmem:[%s240 + $0x18] sm:$0xff]
        %v973 = vld [vmem:[%s240 + $0x20] sm:$0xff]
        %v974 = vld [vmem:[%s240 + $0x28] sm:$0xff]
        %v975 = vld [vmem:[%s240 + $0x30] sm:$0xff]
        %v976 = vld [vmem:[%s240 + $0x38] sm:$0xff]
        %v977 = vld [vmem:[%s240 + $0x40] sm:$0xff]
        %v978 = vld [vmem:[%s240 + $0x48] sm:$0xff]
        %v979 = vld [vmem:[%s240 + $0x50] sm:$0xff]
        %v980 = vld [vmem:[%s240 + $0x58] sm:$0xff]
        %v981 = vld [vmem:[%s240 + $0x60] sm:$0xff]
        %v982 = vld [vmem:[%s240 + $0x68] sm:$0xff]
        %v983 = vld [vmem:[%s240 + $0x70] sm:$0xff]
        %v984 = vld [vmem:[%s240 + $0x78] sm:$0xff]
        %986 = vset.pattern.permute.xlu0 0
        %987 = vperm.xlu0 %986, %v969
        %v988 = vpop.permute.xlu0 %987
        %991 = vset.pattern.permute.xlu0 0
        %992 = vperm.xlu0 %991, %v970
        %v993 = vpop.permute.xlu0 %992
        %996 = vset.pattern.permute.xlu0 0
        %997 = vperm.xlu0 %996, %v971
        %v998 = vpop.permute.xlu0 %997
        %1001 = vset.pattern.permute.xlu0 0
        %1002 = vperm.xlu0 %1001, %v972
        %v1003 = vpop.permute.xlu0 %1002
        %1006 = vset.pattern.permute.xlu0 0
        %1007 = vperm.xlu0 %1006, %v973
        %v1008 = vpop.permute.xlu0 %1007
        %1011 = vset.pattern.permute.xlu0 0
        %1012 = vperm.xlu0 %1011, %v974
        %v1013 = vpop.permute.xlu0 %1012
        %1016 = vset.pattern.permute.xlu0 0
        %1017 = vperm.xlu0 %1016, %v975
        %v1018 = vpop.permute.xlu0 %1017
        %1021 = vset.pattern.permute.xlu0 0
        %1022 = vperm.xlu0 %1021, %v976
        %v1023 = vpop.permute.xlu0 %1022
        %1026 = vset.pattern.permute.xlu0 0
        %1027 = vperm.xlu0 %1026, %v977
        %v1028 = vpop.permute.xlu0 %1027
        %1031 = vset.pattern.permute.xlu0 0
        %1032 = vperm.xlu0 %1031, %v978
        %v1033 = vpop.permute.xlu0 %1032
        %1036 = vset.pattern.permute.xlu0 0
        %1037 = vperm.xlu0 %1036, %v979
        %v1038 = vpop.permute.xlu0 %1037
        %1041 = vset.pattern.permute.xlu0 0
        %1042 = vperm.xlu0 %1041, %v980
        %v1043 = vpop.permute.xlu0 %1042
        %1046 = vset.pattern.permute.xlu0 0
        %1047 = vperm.xlu0 %1046, %v981
        %v1048 = vpop.permute.xlu0 %1047
        %1051 = vset.pattern.permute.xlu0 0
        %1052 = vperm.xlu0 %1051, %v982
        %v1053 = vpop.permute.xlu0 %1052
        %1056 = vset.pattern.permute.xlu0 0
        %1057 = vperm.xlu0 %1056, %v983
        %v1058 = vpop.permute.xlu0 %1057
        %1061 = vset.pattern.permute.xlu0 0
        %1062 = vperm.xlu0 %1061, %v984
        %v1063 = vpop.permute.xlu0 %1062
        %v1065 = vmul.f32 %v912, %v988
        %v1066 = vmul.f32 %v913, %v993
        %v1067 = vmul.f32 %v914, %v998
        %v1068 = vmul.f32 %v915, %v1003
        %v1069 = vmul.f32 %v916, %v1008
        %v1070 = vmul.f32 %v917, %v1013
        %v1071 = vmul.f32 %v918, %v1018
        %v1072 = vmul.f32 %v919, %v1023
        %v1073 = vmul.f32 %v920, %v1028
        %v1074 = vmul.f32 %v921, %v1033
        %v1075 = vmul.f32 %v922, %v1038
        %v1076 = vmul.f32 %v923, %v1043
        %v1077 = vmul.f32 %v924, %v1048
        %v1078 = vmul.f32 %v925, %v1053
        %v1079 = vmul.f32 %v926, %v1058
        %v1080 = vmul.f32 %v927, %v1063
        %v1081 = vadd.f32 %v1065, %v1066
        %v1082 = vadd.f32 %v1081, %v1067
        %v1083 = vadd.f32 %v1082, %v1068
        %v1084 = vadd.f32 %v1083, %v1069
        %v1085 = vadd.f32 %v1084, %v1070
        %v1086 = vadd.f32 %v1085, %v1071
        %v1087 = vadd.f32 %v1086, %v1072
        %v1088 = vadd.f32 %v1087, %v1073
        %v1089 = vadd.f32 %v1088, %v1074
        %v1090 = vadd.f32 %v1089, %v1075
        %v1091 = vadd.f32 %v1090, %v1076
        %v1092 = vadd.f32 %v1091, %v1077
        %v1093 = vadd.f32 %v1092, %v1078
        %v1094 = vadd.f32 %v1093, %v1079
        %v1095 = vadd.f32 %v1094, %v1080
        %v1096 = vrot.slane %v1095, 4
        %v1097 = vadd.f32 %v1095, %v1096
        %v1098 = vrot.slane %v1097, 2
        %v1099 = vadd.f32 %v1097, %v1098
        %v1100 = vrot.slane %v1099, 1
        %v1101 = vadd.f32 %v1099, %v1100
        %v1102 = vadd.f32 %v968, %v1101
        %1103 = vst [vmem:[#allocation3] sm:$0x1] %v1102
        %p1104 = scmp.eq.s32.totalorder %s30, 3
        // Predicated region
        $region41: #{tpu_custom_call.1} parent=31 // pred_check
          %p1105 = pneg %p1104
        $region42: #{tpu_custom_call.1} parent=31 // pred_check_branch
          %1107 = sbr.rel (%p1105) target = $region44
        $region43: #{tpu_custom_call.1} parent=31 // pred_region
          %s1108 = sld [smem:[#allocation5]]
          %s1109 = sld [smem:[#allocation5 + $0x1]]
          %s1110 = sld [smem:[#allocation5 + $0x2]]
          %v1111 = vld [vmem:[#allocation3] sm:$0x1]
          %v1112 = vstv %s1108
          %v1113 = vadd.f32 %v1111, %v1112
          %v1114 = vld [vmem:[#allocation2] sm:$0x1]
          %v1115 = vstv %s1109
          %v1116 = vadd.f32 %v1114, %v1115
          %v1117 = vstv %s1110
          %v1118 = vadd.f32 %v1117, %v1116
          %v1119 = vmax.f32 %v1118, 1e-20
          %v1120 = vlog2.pop %v1119
          %v1121 = vmul.f32 %v1120, 0.6931472
          %v1122 = vmul.f32 %v1121, 0.5
          %v1123 = vadd.f32 %v1122, 1.4189385
          %1124 = vst [vmem:[#allocation9] sm:$0x1] %v1113
          %1125 = vst [vmem:[#allocation9 + $0x1] sm:$0x1] %v1116
          %1126 = vst [vmem:[#allocation9 + $0x2] sm:$0x1] %v1123
        $region44: #{tpu_custom_call.1} parent=31 // pred_fallthru
          _
        // Predicated region
        $region45: #{tpu_custom_call.1} parent=31 // pred_check
          %p1127 = pneg %p133
        $region46: #{tpu_custom_call.1} parent=31 // pred_check_branch
          %1129 = sbr.rel (%p1127) target = $region48
        $region47: #{tpu_custom_call.1} parent=31 // pred_region
          %s1131 = ssub.s32 64, 64
          %1132 = vsyncadd [#allocation8], %s1131
          %s1133 = smul.addr %s29, 64
          %s1134 = scalar_lea.hbm %s4, %s1133
          %s1136 = sshll.u32 [#allocation9], 4
          %s1137 = int_to_ptr.vmem [resolvable:$true] %s1136
          %1139 = dma.vmem_to_hbm [thread:$0]  %s1137, 64, %s1134, [#allocation8]
        $region48: #{tpu_custom_call.1} parent=31 // pred_fallthru
          _
        // Predicated region
        $region49: #{tpu_custom_call.1} parent=31 // pred_check
          %p1140 = pneg %p133
        $region50: #{tpu_custom_call.1} parent=31 // pred_check_branch
          %1142 = sbr.rel (%p1140) target = $region52
        $region51: #{tpu_custom_call.1} parent=31 // pred_region
          %1143 = dma.done [#allocation8], 64
        $region52: #{tpu_custom_call.1} parent=31 // pred_fallthru
          _
      $region32: #{tpu_custom_call.1} parent=5 // pred_fallthru
        _
      %p1144 = scmp.le.s32.totalorder 2, %s20
      // Predicated region
      $region53: #{tpu_custom_call.1} parent=5 // pred_check
        %p1145 = pneg %p1144
      $region54: #{tpu_custom_call.1} parent=5 // pred_check_branch
        %1147 = sbr.rel (%p1145) target = $region56
      $region55: #{tpu_custom_call.1} parent=5 // pred_region
        %s1148 = ssub.s32 %s20, 2
      $region56: #{tpu_custom_call.1} parent=5 // pred_fallthru
        _
    $region6: #{tpu_custom_call.1} parent=1 // loop_footer
      %s24 = sadd.s32 1, %s20
    $region7: #{tpu_custom_call.1} parent=1 // loop_footer_branch
      %19 = sbr.rel target = $region3
    $region8: #{tpu_custom_call.1} parent=1 // loop_exit
      _
    %1149 = vsyncpa [#allocation7], 1
    %s1150 = scalar_lea.sflag [#allocation7], 1
    %1151 = vsyncpa %s1150, 1
    %1152 = vsyncpa [#allocation8], 1
    %s1153 = scalar_lea.sflag [#allocation8], 1
    %1154 = vsyncpa %s1153, 1

</llo_original>
